<compile_context>
chip_gen: v7x
topology: tpu7x:2x2x1
jax: 0.10.0
libtpu: 0.0.40
codegen_flags: <defaults>
</compile_context>

<pallas_src>
import math
from functools import partial

import jax
import jax.numpy as jnp
from jax.experimental import pallas as pl
from jax.experimental.pallas import tpu as pltpu


def _get_pad(size: int, multiple: int):
    new_size = math.ceil(size / multiple) * multiple
    pad = new_size - size
    left = pad // 2
    right = pad - left
    return left, right


def _round_up(x: int, m: int) -> int:
    return -(-x // m) * m


def _sublane(itemsize: int) -> int:
    # Sub-32-bit dtypes pack along sublanes: f32 -> 8, bf16 -> 16, int8 -> 32.
    return max(8, 32 // max(1, itemsize))


def _vmem_capacity_bytes() -> int:
    """Conservative per-TensorCore VMEM capacity for the current backend."""
    try:
        kind = jax.devices()[0].device_kind.lower()
    except Exception:
        kind = ""
    if "v5" in kind or "v6" in kind:
        return 128 * 1024 * 1024
    # v7x has 64 MiB / TC; also the safe default for unknown chips.
    return 64 * 1024 * 1024


def _pick_bc(nc: int, bc_max: int, align: int = 1) -> int:
    """Planes-per-grid-step: all of nc if it fits, otherwise the
    `align`-aligned candidate minimizing (#grid steps, wasted tail planes)."""
    bc_max = max(1, min(bc_max, nc))
    if bc_max >= nc:
        return nc
    if align > bc_max:
        return bc_max
    best_bc, best_key = align, None
    for cand in range(align, bc_max + 1, align):
        steps = -(-nc // cand)
        waste = steps * cand - nc
        key = (steps, waste)
        if best_key is None or key < best_key:
            best_key, best_bc = key, cand
    return best_bc


def _center_pad_hw_kernel(x_ref, o_ref, *, pad_top, pad_bot, pad_left,
                          pad_right, h, w):
    # x_ref: (bc, H, W)   o_ref: (bc, H_out, W_out)
    bc, h_out, w_out = o_ref.shape
    dt = o_ref.dtype

    # Interior: the input plane, written once at its centered offsets.
    o_ref[:, pad_top:pad_top + h, pad_left:pad_left + w] = x_ref[...]

    # Borders: zero only the padded slabs (disjoint from the interior).
    # Static Python `if`s -> no code at all when a pad is zero.
    # TODO(synk): a single offset-0 full-block store (pad in registers) could
    # save masked vst slots on v5e; keep the proven slab form until it can be
    # bundle-verified (kernel is HBM-bound, so this is likely filler).
    if pad_top:
        o_ref[:, :pad_top, :] = jnp.zeros((bc, pad_top, w_out), dt)
    if pad_bot:
        o_ref[:, pad_top + h:, :] = jnp.zeros((bc, pad_bot, w_out), dt)
    if pad_left:
        o_ref[:, pad_top:pad_top + h, :pad_left] = jnp.zeros((bc, h, pad_left), dt)
    if pad_right:
        o_ref[:, pad_top:pad_top + h, pad_left + w:] = jnp.zeros((bc, h, pad_right), dt)


def _center_pad_rows_kernel(x_ref, o_ref, *, top, interior, bot):
    # Lane-dense variant for the no-W-pad case.
    # x_ref: (bc, H*W)   o_ref: (bc, H_out*W); top/bot are whole zero rows.
    bc = o_ref.shape[0]
    dt = o_ref.dtype
    o_ref[:, top:top + interior] = x_ref[...]
    if top:
        o_ref[:, :top] = jnp.zeros((bc, top), dt)
    if bot:
        o_ref[:, top + interior:] = jnp.zeros((bc, bot), dt)


def center_padding(x: jax.Array, multiple: int) -> jax.Array:
    """Pallas implementation of CenterPadding.forward for NCHW inputs."""
    assert x.ndim == 4, "center_padding expects NCHW input"
    n, c, h, w = x.shape
    pad_top, pad_bot = _get_pad(h, multiple)
    pad_left, pad_right = _get_pad(w, multiple)
    h_out = h + pad_top + pad_bot
    w_out = w + pad_left + pad_right

    # Early exit: H and W already multiples -> F.pad is the identity.
    if pad_top == pad_bot == pad_left == pad_right == 0:
        return x

    nc = n * c
    itemsize = jnp.dtype(x.dtype).itemsize
    sub = _sublane(itemsize)
    vmem_cap = _vmem_capacity_bytes()
    v7x_like = vmem_cap <= 64 * 1024 * 1024

    # Single-copy (in-tile + out-tile) byte budget per grid step; the pipeline
    # double-buffers this, so the working set is ~2x the budget.
    budget = (12 if v7x_like else 20) * 1024 * 1024
    cost = pl.CostEstimate(
        flops=0, transcendentals=0,
        bytes_accessed=(nc * h * w + nc * h_out * w_out) * itemsize)

    lane_dense = (pad_left == 0 and pad_right == 0)
    if lane_dense:
        # Flatten (H, W) into one wide trailing dim; padding only inserts
        # whole rows, so the interior is one contiguous slab of that axis.
        l_in, l_out = h * w, h_out * w_out
        row_tiled = (_round_up(l_in, 128) + _round_up(l_out, 128)) * itemsize
        bc_max = max(1, budget // row_tiled)
        if v7x_like and nc >= 2 and pl.cdiv(nc, 2) >= sub:
            bc_max = min(bc_max, pl.cdiv(nc, 2))  # >= 2 steps for both TCs
        bc = _pick_bc(nc, bc_max, align=sub)
        if bc != nc and bc % sub != 0:
            lane_dense = False  # keep blocks sublane-aligned; fall back
        else:
            step_bytes = _round_up(bc, sub) * row_tiled
            kernel = partial(_center_pad_rows_kernel,
                             top=pad_top * w, interior=l_in, bot=pad_bot * w)
            x_in = x.reshape(nc, l_in)
            grid = (pl.cdiv(nc, bc),)
            in_spec = pl.BlockSpec((bc, l_in), lambda i: (i, 0))
            out_spec = pl.BlockSpec((bc, l_out), lambda i: (i, 0))
            out_shape = jax.ShapeDtypeStruct((nc, l_out), x.dtype)

    if not lane_dense:
        in_plane = _round_up(h, sub) * _round_up(w, 128) * itemsize
        out_plane = _round_up(h_out, sub) * _round_up(w_out, 128) * itemsize
        plane_tiled = in_plane + out_plane
        bc_max = max(1, budget // plane_tiled)
        if v7x_like and nc >= 2:
            bc_max = min(bc_max, pl.cdiv(nc, 2))  # >= 2 steps for both TCs
        bc = _pick_bc(nc, bc_max)
        step_bytes = bc * plane_tiled
        kernel = partial(_center_pad_hw_kernel,
                         pad_top=pad_top, pad_bot=pad_bot,
                         pad_left=pad_left, pad_right=pad_right, h=h, w=w)
        x_in = x.reshape(nc, h, w)
        grid = (pl.cdiv(nc, bc),)
        in_spec = pl.BlockSpec((bc, h, w), lambda i: (i, 0, 0))
        out_spec = pl.BlockSpec((bc, h_out, w_out), lambda i: (i, 0, 0))
        out_shape = jax.ShapeDtypeStruct((nc, h_out, w_out), x.dtype)

    # Scoped VMEM: actual double-buffered footprint plus slack, clamped under
    # the physical per-core capacity with headroom.
    vmem_limit = int(2 * step_bytes * 1.25) + (2 << 20)
    vmem_limit = max(vmem_limit, 32 << 20)
    vmem_limit = min(vmem_limit, vmem_cap - (8 << 20))

    out = pl.pallas_call(
        kernel,
        out_shape=out_shape,
        grid_spec=pltpu.PrefetchScalarGridSpec(
            num_scalar_prefetch=0,
            grid=grid,
            in_specs=[in_spec],
            out_specs=out_spec,
        ),
        compiler_params=pltpu.CompilerParams(
            dimension_semantics=("parallel",),
            vmem_limit_bytes=vmem_limit,
        ),
        cost_estimate=cost,
    )(x_in)

    return out.reshape(n, c, h_out, w_out)


if __name__ == "__main__":
    key = jax.random.PRNGKey(0)
    multiple = 7

    # 1) General path: H and W both padded (16 -> 21, left=2 / right=3).
    x = jax.random.normal(key, (2, 4, 16, 16), dtype=jnp.float32)
    out = jax.block_until_ready(center_padding(x, multiple))
    pt, pb = _get_pad(x.shape[2], multiple)
    plf, prt = _get_pad(x.shape[3], multiple)
    ref = jnp.pad(x, ((0, 0), (0, 0), (pt, pb), (plf, prt)))
    assert out.shape == ref.shape, (out.shape, ref.shape)
    assert jnp.allclose(out, ref), "general-path mismatch vs reference"

    # 2) Lane-dense path: only H needs padding (16 -> 21, W = 14 untouched).
    x2 = jax.random.normal(key, (2, 3, 16, 14), dtype=jnp.float32)
    out2 = jax.block_until_ready(center_padding(x2, multiple))
    ref2 = jnp.pad(x2, ((0, 0), (0, 0), (2, 3), (0, 0)))
    assert out2.shape == ref2.shape and jnp.allclose(out2, ref2), "lane-dense mismatch"

    # 3) Early-exit path: H and W already multiples -> identity, no kernel.
    x3 = jax.random.normal(key, (3, 5, 14, 21), dtype=jnp.float32)
    out3 = jax.block_until_ready(center_padding(x3, multiple))
    assert out3.shape == x3.shape and jnp.allclose(out3, x3), "early-exit mismatch"

    print("KERNEL_OK")
</pallas_src>

<mosaic_0001>
module attributes {stable_mosaic.version = 11 : i64} {
  func.func @_center_pad_hw_kernel(%arg0: i32, %arg1: memref<4x16x16xf32, #tpu.memory_space<vmem>>, %arg2: memref<4x21x21xf32, #tpu.memory_space<vmem>>) attributes {dimension_semantics = [#tpu.dimension_semantics<parallel>], iteration_bounds = array<i64: 2>, scalar_prefetch = 0 : i64, scratch_operands = 0 : i64, tpu.core_type = #tpu.core_type<tc>, window_params = [{transform_indices = @transform_0, window_bounds = array<i64: 4, 16, 16>}, {transform_indices = @transform_1, window_bounds = array<i64: 4, 21, 21>}]} {
    %c0 = arith.constant 0 : index
    %c0_0 = arith.constant 0 : index
    %c0_1 = arith.constant 0 : index
    %0 = vector.load %arg1[%c0, %c0_0, %c0_1] : memref<4x16x16xf32, #tpu.memory_space<vmem>>, vector<4x16x16xf32>
    %c0_2 = arith.constant 0 : index
    %c2 = arith.constant 2 : index
    %c2_3 = arith.constant 2 : index
    %1 = vector.load %arg2[%c0_2, %c2, %c2_3] : memref<4x21x21xf32, #tpu.memory_space<vmem>>, vector<4x16x16xf32>
    tpu.vector_store %arg2[%c0_2, %c2, %c2_3], %0 {strides = array<i32>} : memref<4x21x21xf32, #tpu.memory_space<vmem>>, vector<4x16x16xf32>,
    %cst = arith.constant 0.000000e+00 : f32
    %2 = vector.broadcast %cst : f32 to vector<4x2x21xf32>
    %c0_4 = arith.constant 0 : index
    %c0_5 = arith.constant 0 : index
    %c0_6 = arith.constant 0 : index
    %3 = vector.load %arg2[%c0_4, %c0_5, %c0_6] : memref<4x21x21xf32, #tpu.memory_space<vmem>>, vector<4x2x21xf32>
    tpu.vector_store %arg2[%c0_4, %c0_5, %c0_6], %2 {strides = array<i32>} : memref<4x21x21xf32, #tpu.memory_space<vmem>>, vector<4x2x21xf32>,
    %cst_7 = arith.constant 0.000000e+00 : f32
    %4 = vector.broadcast %cst_7 : f32 to vector<4x3x21xf32>
    %c0_8 = arith.constant 0 : index
    %c18 = arith.constant 18 : index
    %c0_9 = arith.constant 0 : index
    %5 = vector.load %arg2[%c0_8, %c18, %c0_9] : memref<4x21x21xf32, #tpu.memory_space<vmem>>, vector<4x3x21xf32>
    tpu.vector_store %arg2[%c0_8, %c18, %c0_9], %4 {strides = array<i32>} : memref<4x21x21xf32, #tpu.memory_space<vmem>>, vector<4x3x21xf32>,
    %cst_10 = arith.constant 0.000000e+00 : f32
    %6 = vector.broadcast %cst_10 : f32 to vector<4x16x2xf32>
    %c0_11 = arith.constant 0 : index
    %c2_12 = arith.constant 2 : index
    %c0_13 = arith.constant 0 : index
    %7 = vector.load %arg2[%c0_11, %c2_12, %c0_13] : memref<4x21x21xf32, #tpu.memory_space<vmem>>, vector<4x16x2xf32>
    tpu.vector_store %arg2[%c0_11, %c2_12, %c0_13], %6 {strides = array<i32>} : memref<4x21x21xf32, #tpu.memory_space<vmem>>, vector<4x16x2xf32>,
    %cst_14 = arith.constant 0.000000e+00 : f32
    %8 = vector.broadcast %cst_14 : f32 to vector<4x16x3xf32>
    %c0_15 = arith.constant 0 : index
    %c2_16 = arith.constant 2 : index
    %c18_17 = arith.constant 18 : index
    %9 = vector.load %arg2[%c0_15, %c2_16, %c18_17] : memref<4x21x21xf32, #tpu.memory_space<vmem>>, vector<4x16x3xf32>
    tpu.vector_store %arg2[%c0_15, %c2_16, %c18_17], %8 {strides = array<i32>} : memref<4x21x21xf32, #tpu.memory_space<vmem>>, vector<4x16x3xf32>,
    return
  }
  func.func @transform_0(%arg0: i32) -> (i32, i32, i32) {
    %c0_i32 = arith.constant 0 : i32
    %c0_i32_0 = arith.constant 0 : i32
    %c0_i32_1 = arith.constant 0 : i32
    return %arg0, %c0_i32, %c0_i32_0 : i32, i32, i32
  }
  func.func @transform_1(%arg0: i32) -> (i32, i32, i32) {
    %c0_i32 = arith.constant 0 : i32
    %c0_i32_0 = arith.constant 0 : i32
    %c0_i32_1 = arith.constant 0 : i32
    return %arg0, %c0_i32, %c0_i32_0 : i32, i32, i32
  }
}

</mosaic_0001>

<llo_original>
// kernel: tpu_custom_call.1
$region0: #{tpu_custom_call.1}
  #allocation0 [shape = 'u32[]', space=smem, size = 0x4, offset = 0x4, fixed_abs, tag = 'smem constant byte address 0x4 - core index']
  #allocation1 [shape = 'u32[144,128]{1,0:T(1,128)}', space=vmem, size = 0x12000, scoped, tag = 'internal scratch']
  %s0 = inlined_call_operand.hbm [shape: f32[8,16,16], index: 0, kind: input, shape index: {}]
  %s1 = inlined_call_operand.vmem [shape: f32[8,21,21], index: 1, kind: output, shape index: {}]
  %s2 = sld [smem:[#allocation0]]
  $region41: #{tpu_custom_call.1} parent=0
    _
  %s4 = ssub.s32 1, %s2
  %s5 = scalar_select 0, %s4, %s2
  $region1: #{tpu_custom_call.1} parent=0
    #allocation2 [shape = 'u8[65536]{0}', space=vmem, size = 0x10000, scoped, tag = 'input window, operand 0']
    #allocation3 [shape = 's32[2]{0}', space=sflag, size = 0x8, scoped, tag = 'scoped memory for tpu_custom_call.1']
    %6 = vsyncpa [#allocation3], 0
    %s7 = scalar_lea.sflag [#allocation3], 1
    %8 = vsyncpa %s7, 0
    loop: start=0, step=1, limit=4
    $region2: #{tpu_custom_call.1} parent=1 // loop_pre_header
      _
    $region3: #{tpu_custom_call.1} parent=1 // loop_header
      %s10 = sphi 0, %s14
      %p11 = scmp.ge.s32.totalorder %s10, 4
      %s20 = sphi 0, %s22
      %s23 = sphi 0, %s20
      %s24 = sphi 0, %s23
      %s40 = sphi 0, %s24
      %s46 = sphi 0, %s48
      %s49 = sphi 0, %s46
      %s50 = sphi 0, %s49
      %s66 = sphi 0, %s50
    $region4: #{tpu_custom_call.1} parent=1 // loop_header_branch
      %13 = sbr.rel (%p11) target = $region8
    $region5: #{tpu_custom_call.1} parent=1 // loop_body
      %s15 = ssub.s32 %s10, 1
      %s16 = ssub.s32 %s10, 2
      %s17 = sadd.s32 %s10, 1
      %s18 = ssub.s32 %s10, %s17
      %p19 = scmp.eq.s32.totalorder %s18, 0
      %s21 = sadd.s32 %s20, 1
      %s22 = scalar_select %p19, %s20, %s21
      %p25 = pneg %p19
      %p26 = scmp.eq.s32.totalorder %s10, 1
      %p27 = por %p25, %p26
      %p28 = scmp.ne.s32.totalorder %s20, %s23
      %p29 = scmp.eq.s32.totalorder %s10, 0
      %p30 = por %p28, %p29
      %p31 = scmp.ne.s32.totalorder %s20, %s23
      %p32 = scmp.eq.s32.totalorder %s15, 1
      %p33 = por %p31, %p32
      %p34 = scmp.ne.s32.totalorder %s23, %s24
      %p35 = scmp.eq.s32.totalorder %s15, 0
      %p36 = por %p34, %p35
      %p37 = scmp.ne.s32.totalorder %s23, %s24
      %p38 = scmp.eq.s32.totalorder %s16, 1
      %p39 = por %p37, %p38
      %p41 = scmp.ne.s32.totalorder %s24, %s40
      %p42 = scmp.eq.s32.totalorder %s16, 0
      %p43 = por %p41, %p42
      %s44 = ssub.s32 %s10, %s17
      %p45 = scmp.eq.s32.totalorder %s44, 0
      %s47 = sadd.s32 %s46, 1
      %s48 = scalar_select %p45, %s46, %s47
      %p51 = pneg %p45
      %p52 = scmp.eq.s32.totalorder %s10, 1
      %p53 = por %p51, %p52
      %p54 = scmp.ne.s32.totalorder %s46, %s49
      %p55 = scmp.eq.s32.totalorder %s10, 0
      %p56 = por %p54, %p55
      %p57 = scmp.ne.s32.totalorder %s46, %s49
      %p58 = scmp.eq.s32.totalorder %s15, 1
      %p59 = por %p57, %p58
      %p60 = scmp.ne.s32.totalorder %s49, %s50
      %p61 = scmp.eq.s32.totalorder %s15, 0
      %p62 = por %p60, %p61
      %p63 = scmp.ne.s32.totalorder %s49, %s50
      %p64 = scmp.eq.s32.totalorder %s16, 1
      %p65 = por %p63, %p64
      %p67 = scmp.ne.s32.totalorder %s50, %s66
      %p68 = scmp.eq.s32.totalorder %s16, 0
      %p69 = por %p67, %p68
      %p70 = scmp.le.s32.totalorder 1, %s10
      %p71 = scmp.lt.s32.totalorder %s10, 3
      %p72 = pnand %p70, %p71
      %p73 = pneg %p72
      // Predicated region
      $region9: #{tpu_custom_call.1} parent=5 // pred_check
        _
      $region10: #{tpu_custom_call.1} parent=5 // pred_check_branch
        %75 = sbr.rel (%p72) target = $region12
      $region11: #{tpu_custom_call.1} parent=5 // pred_region
        %s76 = ssub.s32 %s10, 1
      $region12: #{tpu_custom_call.1} parent=5 // pred_fallthru
        _
      %p77 = scmp.lt.s32.totalorder %s10, 2
      // Predicated region
      $region13: #{tpu_custom_call.1} parent=5 // pred_check
        %p78 = pneg %p77
      $region14: #{tpu_custom_call.1} parent=5 // pred_check_branch
        %80 = sbr.rel (%p78) target = $region16
      $region15: #{tpu_custom_call.1} parent=5 // pred_region
        // Predicated region
        $region17: #{tpu_custom_call.1} parent=15 // pred_check
          %p81 = pneg %p30
        $region18: #{tpu_custom_call.1} parent=15 // pred_check_branch
          %83 = sbr.rel (%p81) target = $region20
        $region19: #{tpu_custom_call.1} parent=15 // pred_region
          %s84 = sand.u32 %s20, 1
          %s85 = scalar_lea.sflag [#allocation3], %s84
          %s86 = sand.u32 %s20, 1
          %s87 = smul.addr %s86, 64
          %s88 = scalar_lea.vmem [#allocation2], %s87
          %s89 = smul.u32 4, %s10
          %s91 = ssub.s32 1024, 1024
          %92 = vsyncadd %s85, %s91
          %s93 = smul.addr %s89, 2
          %s94 = smul.addr %s93, 128
          %s95 = scalar_lea.hbm %s0, %s94
          %s96 = sshll.u32 %s88, 4
          %s97 = int_to_ptr.vmem [resolvable:$true] %s96
          %102 = dma.hbm_to_vmem [thread:$0]  %s95, 1024, %s97, %s85, 128, 128, 8
        $region20: #{tpu_custom_call.1} parent=15 // pred_fallthru
          _
      $region16: #{tpu_custom_call.1} parent=5 // pred_fallthru
        _
      %p103 = scmp.le.s32.totalorder 1, %s10
      %p104 = scmp.lt.s32.totalorder %s10, 3
      %p105 = pnand %p103, %p104
      %p106 = pneg %p105
      // Predicated region
      $region21: #{tpu_custom_call.1} parent=5 // pred_check
        _
      $region22: #{tpu_custom_call.1} parent=5 // pred_check_branch
        %108 = sbr.rel (%p105) target = $region24
      $region23: #{tpu_custom_call.1} parent=5 // pred_region
        %s109 = ssub.s32 %s10, 1
        %s110 = sand.u32 %s23, 1
        %s111 = scalar_lea.sflag [#allocation3], %s110
        %s112 = sand.u32 %s23, 1
        %s113 = smul.addr %s112, 64
        %s114 = scalar_lea.vmem [#allocation2], %s113
        // Predicated region
        $region25: #{tpu_custom_call.1} parent=23 // pred_check
          %p115 = pneg %p36
        $region26: #{tpu_custom_call.1} parent=23 // pred_check_branch
          %117 = sbr.rel (%p115) target = $region28
        $region27: #{tpu_custom_call.1} parent=23 // pred_region
          %118 = dma.done %s111, 1024
        $region28: #{tpu_custom_call.1} parent=23 // pred_fallthru
          _
        %s119 = sand.u32 %s23, 1
        %s120 = scalar_lea.sflag [#allocation3], %s119
        %s121 = sand.u32 %s23, 1
        %s122 = smul.addr %s121, 64
        %s123 = scalar_lea.vmem [#allocation2], %s122
        %p124 = pneg %p36
        %p125 = pneg %p33
        %p126 = pneg %p62
        %p127 = pneg %p59
        %s128 = smul.u32 4, %s15
        %p129 = scmp.lt.s32.totalorder %s128, 7
        %s130 = scalar_select %p129, %s128, 7
        %s131 = smul.addr %s130, 3
        %s132 = smul.addr %s131, 8
        %s133 = scalar_lea.vmem %s1, %s132
        %s134 = smul.u32 4, %s15
        %s135 = smul.u32 4, %s15
        %p136 = scmp.lt.s32.totalorder %s135, 7
        %s137 = scalar_select %p136, %s135, 7
        %s138 = smul.addr %s137, 3
        %s139 = smul.addr %s138, 8
        %s140 = scalar_lea.vmem %s1, %s139
        %s141 = smul.u32 4, %s15
        %v142 = vld [vmem:[%s114] sm:$0xff]
        %v143 = vld [vmem:[%s114 + $0x8] sm:$0xff]
        %v144 = vld [vmem:[%s114 + $0x10] sm:$0xff]
        %v145 = vld [vmem:[%s114 + $0x18] sm:$0xff]
        %v146 = vld [vmem:[%s114 + $0x20] sm:$0xff]
        %v147 = vld [vmem:[%s114 + $0x28] sm:$0xff]
        %v148 = vld [vmem:[%s114 + $0x30] sm:$0xff]
        %v149 = vld [vmem:[%s114 + $0x38] sm:$0xff]
        %158 = vrot.lane.b32.xlu0 %v142, 2
        %v159 = vpop.permute.xlu0 %158
        %160 = vrot.lane.b32.xlu0 %v143, 2
        %v161 = vpop.permute.xlu0 %160
        %162 = vrot.lane.b32.xlu0 %v144, 2
        %v163 = vpop.permute.xlu0 %162
        %164 = vrot.lane.b32.xlu0 %v145, 2
        %v165 = vpop.permute.xlu0 %164
        %166 = vrot.lane.b32.xlu0 %v146, 2
        %v167 = vpop.permute.xlu0 %166
        %168 = vrot.lane.b32.xlu0 %v147, 2
        %v169 = vpop.permute.xlu0 %168
        %170 = vrot.lane.b32.xlu0 %v148, 2
        %v171 = vpop.permute.xlu0 %170
        %172 = vrot.lane.b32.xlu0 %v149, 2
        %v173 = vpop.permute.xlu0 %172
        %vm182 = vcmask 146448
        %183 = vst.msk [vmem:[%s140 + $0x2] sm:$0xff] %vm182, %v159
        %184 = vst.msk [vmem:[%s140 + $0xa] sm:$0xff] %vm182, %v161
        %185 = vst.msk [vmem:[%s140 + $0x1a] sm:$0xff] %vm182, %v163
        %186 = vst.msk [vmem:[%s140 + $0x22] sm:$0xff] %vm182, %v165
        %187 = vst.msk [vmem:[%s140 + $0x32] sm:$0xff] %vm182, %v167
        %188 = vst.msk [vmem:[%s140 + $0x3a] sm:$0xff] %vm182, %v169
        %189 = vst.msk [vmem:[%s140 + $0x4a] sm:$0xff] %vm182, %v171
        %190 = vst.msk [vmem:[%s140 + $0x52] sm:$0xff] %vm182, %v173
        %vm191 = vcmask 164864
        %192 = vst.msk [vmem:[%s140] sm:$0x3] %vm191, 0.0
        %193 = vst.msk [vmem:[%s140 + $0x18] sm:$0x3] %vm191, 0.0
        %194 = vst.msk [vmem:[%s140 + $0x30] sm:$0x3] %vm191, 0.0
        %195 = vst.msk [vmem:[%s140 + $0x48] sm:$0x3] %vm191, 0.0
        %vm196 = vcmask 165888
        %197 = vst.msk [vmem:[%s140 + $0x12] sm:$0x7] %vm196, 0.0
        %198 = vst.msk [vmem:[%s140 + $0x2a] sm:$0x7] %vm196, 0.0
        %199 = vst.msk [vmem:[%s140 + $0x42] sm:$0x7] %vm196, 0.0
        %200 = vst.msk [vmem:[%s140 + $0x5a] sm:$0x7] %vm196, 0.0
        %vm201 = vcmask 15360
        %202 = vst.msk [vmem:[%s140 + $0x2] sm:$0xff] %vm201, 0.0
        %203 = vst.msk [vmem:[%s140 + $0xa] sm:$0xff] %vm201, 0.0
        %204 = vst.msk [vmem:[%s140 + $0x1a] sm:$0xff] %vm201, 0.0
        %205 = vst.msk [vmem:[%s140 + $0x22] sm:$0xff] %vm201, 0.0
        %206 = vst.msk [vmem:[%s140 + $0x32] sm:$0xff] %vm201, 0.0
        %207 = vst.msk [vmem:[%s140 + $0x3a] sm:$0xff] %vm201, 0.0
        %208 = vst.msk [vmem:[%s140 + $0x4a] sm:$0xff] %vm201, 0.0
        %209 = vst.msk [vmem:[%s140 + $0x52] sm:$0xff] %vm201, 0.0
        %vm210 = vcmask 171152
        %211 = vst.msk [vmem:[%s140 + $0x2] sm:$0xff] %vm210, 0.0
        %212 = vst.msk [vmem:[%s140 + $0xa] sm:$0xff] %vm210, 0.0
        %213 = vst.msk [vmem:[%s140 + $0x1a] sm:$0xff] %vm210, 0.0
        %214 = vst.msk [vmem:[%s140 + $0x22] sm:$0xff] %vm210, 0.0
        %215 = vst.msk [vmem:[%s140 + $0x32] sm:$0xff] %vm210, 0.0
        %216 = vst.msk [vmem:[%s140 + $0x3a] sm:$0xff] %vm210, 0.0
        %217 = vst.msk [vmem:[%s140 + $0x4a] sm:$0xff] %vm210, 0.0
        %218 = vst.msk [vmem:[%s140 + $0x52] sm:$0xff] %vm210, 0.0
        %s219 = smul.u32 4, %s15
        %p220 = scmp.lt.s32.totalorder %s219, 7
        %s221 = scalar_select %p220, %s219, 7
        %s222 = smul.addr %s221, 3
        %s223 = smul.addr %s222, 8
        %s224 = scalar_lea.vmem %s1, %s223
        // Predicated region
        $region29: #{tpu_custom_call.1} parent=23 // pred_check
          %p225 = pneg %p59
        $region30: #{tpu_custom_call.1} parent=23 // pred_check_branch
          %227 = sbr.rel (%p225) target = $region32
        $region31: #{tpu_custom_call.1} parent=23 // pred_region
          %s228 = smul.u32 4, %s15
        $region32: #{tpu_custom_call.1} parent=23 // pred_fallthru
          _
      $region24: #{tpu_custom_call.1} parent=5 // pred_fallthru
        _
      %p229 = scmp.le.s32.totalorder 2, %s10
      // Predicated region
      $region33: #{tpu_custom_call.1} parent=5 // pred_check
        %p230 = pneg %p229
      $region34: #{tpu_custom_call.1} parent=5 // pred_check_branch
        %232 = sbr.rel (%p230) target = $region36
      $region35: #{tpu_custom_call.1} parent=5 // pred_region
        %s233 = ssub.s32 %s10, 2
        // Predicated region
        $region37: #{tpu_custom_call.1} parent=35 // pred_check
          %p234 = pneg %p65
        $region38: #{tpu_custom_call.1} parent=35 // pred_check_branch
          %236 = sbr.rel (%p234) target = $region40
        $region39: #{tpu_custom_call.1} parent=35 // pred_region
          %s237 = smul.u32 4, %s16
          %p238 = scmp.lt.s32.totalorder %s237, 7
          %s239 = scalar_select %p238, %s237, 7
          %s240 = smul.addr %s239, 3
          %s241 = smul.addr %s240, 8
          %s242 = scalar_lea.vmem %s1, %s241
        $region40: #{tpu_custom_call.1} parent=35 // pred_fallthru
          _
      $region36: #{tpu_custom_call.1} parent=5 // pred_fallthru
        _
    $region6: #{tpu_custom_call.1} parent=1 // loop_footer
      %s14 = sadd.s32 1, %s10
    $region7: #{tpu_custom_call.1} parent=1 // loop_footer_branch
      %9 = sbr.rel target = $region3
    $region8: #{tpu_custom_call.1} parent=1 // loop_exit
      _
    %243 = vsyncpa [#allocation3], 1
    %s244 = scalar_lea.sflag [#allocation3], 1
    %245 = vsyncpa %s244, 1

</llo_original>
